<compile_context>
chip_gen: v7x
topology: tpu7x:2x2x1
jax: 0.10.0
libtpu: 0.0.40
codegen_flags: <defaults>
</compile_context>

<pallas_src>
import functools

import jax
import jax.numpy as jnp
from jax.experimental import pallas as pl
from jax.experimental.pallas import tpu as pltpu


def _round_up(n: int, m: int) -> int:
    return ((n + m - 1) // m) * m


def _cdiv(a: int, b: int) -> int:
    return (a + b - 1) // b


# --------------------------------------------------------------------------- #
# Kernel: one (batch tile, hidden chunk) per grid step.
#   y_tile = tanh( sum_k relu(x_tile @ W1[:, k] + b1[k]) @ W2[k, :] + b2 )
# Hidden axis is a reduction ("arbitrary"); chunking it commutes exactly with
# the per-hidden-unit ReLU, so the result is identical to the unchunked MLP.
# --------------------------------------------------------------------------- #
def _mlp_kernel(x_ref, w1_ref, b1_ref, w2_ref, b2_ref, o_ref, acc_ref):
    k = pl.program_id(1)

    @pl.when(k == 0)
    def _():
        acc_ref[...] = jnp.zeros_like(acc_ref)

    # First dot on the MXU (f32 accumulation); bias + ReLU on the VPU in f32.
    h = jnp.dot(x_ref[...], w1_ref[...], preferred_element_type=jnp.float32)
    h = jnp.maximum(h + b1_ref[...], 0.0)
    h = h.astype(w2_ref.dtype)                        # back to the MXU dtype
    acc_ref[...] += jnp.dot(h, w2_ref[...], preferred_element_type=jnp.float32)

    @pl.when(k == pl.num_programs(1) - 1)
    def _():
        # tanh on the EUP; lane-dense (128-padded) unmasked vector store.
        o_ref[...] = jnp.tanh(acc_ref[...] + b2_ref[...]).astype(o_ref.dtype)


# --------------------------------------------------------------------------- #
# Parameter preparation (run ONCE, outside the per-call path).
# --------------------------------------------------------------------------- #
def _pad2(a, rows, cols, dtype):
    a = a.astype(dtype)
    pr, pc = rows - a.shape[0], cols - a.shape[1]
    if pr or pc:
        a = jnp.pad(a, ((0, pr), (0, pc)))
    return a


def prepare_params(w1, b1, w2, b2, compute_dtype=jnp.bfloat16):
    """Pad (in,out)-layout weights to lane (128) multiples and cast once.

    Zero-padding is exact: padded x cols / W1 rows contribute 0, padded hidden
    units are ReLU(0+0)=0 against zero W2 rows, padded outputs are sliced off.
    """
    d_in, d_hidden = w1.shape
    d_out = w2.shape[1]
    d_in_p, d_hid_p, d_out_p = (_round_up(d, 128) for d in (d_in, d_hidden, d_out))
    w1_p = _pad2(w1, d_in_p, d_hid_p, compute_dtype)
    w2_p = _pad2(w2, d_hid_p, d_out_p, compute_dtype)
    b1_p = _pad2(jnp.reshape(b1, (1, -1)), 1, d_hid_p, jnp.float32)
    b2_p = _pad2(jnp.reshape(b2, (1, -1)), 1, d_out_p, jnp.float32)
    return (w1_p, b1_p, w2_p, b2_p), (int(d_in), int(d_hidden), int(d_out))


# --------------------------------------------------------------------------- #
# VMEM budgeting & tiling
# --------------------------------------------------------------------------- #
def _vmem_budget(override=None) -> int:
    if override is not None:
        return int(override)
    cap = None
    try:
        cap = getattr(pltpu.get_tpu_info(), "vmem_capacity_bytes", None)
    except Exception:
        cap = None
    if cap is None:
        return 48 << 20                       # conservative: safe on every gen
    cap = int(cap)
    if cap <= (72 << 20):                     # v7x: 64 MiB physical per TC
        return min(cap - (16 << 20), 48 << 20)
    # v5e / v6e: 128 MiB physical; leave ~24 MiB for Mosaic internals.
    return min(cap - (24 << 20), 104 << 20)


def _vmem_footprint(tb, th, d_in_p, d_out_p, cbytes, obytes, resident, x_bufs):
    """Pipeline buffers + scratch + compiler-materialized intermediates."""
    wbuf = 1 if resident else 2
    return (
        x_bufs * tb * d_in_p * cbytes                     # x tile buffers
        + wbuf * (d_in_p * th + th * d_out_p) * cbytes    # W1/W2 chunk buffers
        + wbuf * (th + d_out_p) * 4                       # f32 bias buffers
        + 2 * tb * d_out_p * obytes                       # out tile (double-buffered)
        + tb * d_out_p * 4                                # f32 accumulator scratch
        + tb * th * 4 + tb * th * cbytes                  # f32 hidden + MXU recast
        + tb * d_out_p * 4                                # 2nd-dot result pre-accumulate
    )


def _choose_tiling(B, d_in_p, d_hid_p, d_out_p, cbytes, obytes, block_b,
                   x_bufs, budget):
    # bf16 packs two rows per sublane -> 16-row alignment; f32 -> 8.
    align = 16 if cbytes < 4 else 8
    # Adaptive batch tile: bounds tail padding instead of padding up to block_b.
    n_bt = max(1, _cdiv(B, block_b))
    tb = min(_round_up(_cdiv(B, n_bt), align), _round_up(block_b, align))

    def pick_th(tb_):
        if _vmem_footprint(tb_, d_hid_p, d_in_p, d_out_p, cbytes, obytes,
                           True, x_bufs) <= budget:
            return d_hid_p, True, True            # fully resident weights
        n128 = d_hid_p // 128
        for m in range(n128 - 1, 0, -1):
            if n128 % m:
                continue
            th = m * 128
            if _vmem_footprint(tb_, th, d_in_p, d_out_p, cbytes, obytes,
                               False, x_bufs) <= budget:
                return th, False, True            # stream hidden chunks
        fits = _vmem_footprint(tb_, 128, d_in_p, d_out_p, cbytes, obytes,
                               False, x_bufs) <= budget
        return 128, False, fits

    while True:
        th, resident, fits = pick_th(tb)
        if fits or tb <= align:
            break
        tb = max(align, _round_up(tb // 2, align))
    return tb, th, resident


# --------------------------------------------------------------------------- #
# Forward pass
# --------------------------------------------------------------------------- #
@functools.partial(
    jax.jit,
    static_argnames=("dims", "block_b", "out_dtype", "x_buffers", "max_vmem_bytes"),
)
def one_hidden_layer(x, w1_p, b1_p, w2_p, b2_p, *, dims, block_b=None,
                     out_dtype=None, x_buffers=2, max_vmem_bytes=None):
    d_in, d_hidden, d_out = dims
    B = x.shape[0]
    cdt = w1_p.dtype
    out_dtype = x.dtype if out_dtype is None else out_dtype  # pass bf16 to halve writeback
    cbytes = jnp.dtype(cdt).itemsize
    obytes = jnp.dtype(out_dtype).itemsize

    d_in_p, d_hid_p = w1_p.shape
    d_out_p = w2_p.shape[1]

    budget = _vmem_budget(max_vmem_bytes)
    if block_b is None:
        # Big-VMEM parts (v5e/v6e) take 512-row tiles; v7x defaults to 256.
        block_b = 512 if budget >= (96 << 20) else 256

    tb, th, resident = _choose_tiling(B, d_in_p, d_hid_p, d_out_p, cbytes,
                                      obytes, block_b, x_buffers, budget)
    b_p = _round_up(B, tb)
    hid_chunks = d_hid_p // th
    # NOTE(v7x): with b_p // tb == 1 the second TensorCore idles; nothing to
    # split for tiny batches, but larger B gets >=2 "parallel" batch tiles.
    grid = (b_p // tb, hid_chunks)

    # Fused pad+cast of x only when needed (no zeros+scatter HBM round trip).
    x_c = x if x.dtype == cdt else x.astype(cdt)
    if b_p != B or d_in_p != d_in:
        x_c = jnp.pad(x_c, ((0, b_p - B), (0, d_in_p - d_in)))

    # Grid-invariant blocks get a single buffer; streamed chunks double-buffer.
    wmode = pl.Buffered(1) if resident else pl.Buffered(2)

    cost = pl.CostEstimate(
        flops=2 * B * (d_in * d_hidden + d_hidden * d_out),
        transcendentals=B * d_out,
        bytes_accessed=int(
            b_p * d_in_p * cbytes
            + (d_in_p * d_hid_p + d_hid_p * d_out_p) * cbytes
            + (d_hid_p + d_out_p) * 4
            + b_p * d_out_p * obytes),
    )

    out_p = pl.pallas_call(
        _mlp_kernel,
        out_shape=jax.ShapeDtypeStruct((b_p, d_out_p), out_dtype),
        grid_spec=pltpu.PrefetchScalarGridSpec(
            num_scalar_prefetch=0,
            grid=grid,
            in_specs=[
                # Batch-tiled activations (prefetch tile i+1 while computing i).
                pl.BlockSpec((tb, d_in_p), lambda i, k: (i, 0),
                             pipeline_mode=pl.Buffered(x_buffers)),
                # Hidden-chunked weights / bias (resident when they fit).
                pl.BlockSpec((d_in_p, th), lambda i, k: (0, k), pipeline_mode=wmode),
                pl.BlockSpec((1, th), lambda i, k: (0, k), pipeline_mode=wmode),
                pl.BlockSpec((th, d_out_p), lambda i, k: (k, 0), pipeline_mode=wmode),
                # Output bias is grid-invariant -> single buffer.
                pl.BlockSpec((1, d_out_p), lambda i, k: (0, 0),
                             pipeline_mode=pl.Buffered(1)),
            ],
            out_specs=pl.BlockSpec((tb, d_out_p), lambda i, k: (i, 0)),
            scratch_shapes=[pltpu.VMEM((tb, d_out_p), jnp.float32)],
        ),
        compiler_params=pltpu.CompilerParams(
            dimension_semantics=("parallel", "arbitrary"),
            vmem_limit_bytes=int(max(32 << 20, budget)),
        ),
        cost_estimate=cost,
    )(x_c, w1_p, b1_p, w2_p, b2_p)

    # Strip batch / lane padding.
    return out_p[:B, :d_out]


def one_hidden_layer_from_raw(x, w1, b1, w2, b2, *, compute_dtype=jnp.bfloat16, **kw):
    """Convenience one-shot wrapper (re-pads weights every call; prefer
    prepare_params + one_hidden_layer in a real forward loop)."""
    params, dims = prepare_params(w1, b1, w2, b2, compute_dtype)
    return one_hidden_layer(x, *params, dims=dims, **kw)


def init_params(key, d_in, d_hidden, d_out, dtype=jnp.float32):
    """Deterministic init mimicking nn.Linear default (U(-1/sqrt(fan_in), +))."""
    k1, k2, k3, k4 = jax.random.split(key, 4)
    bound1 = 1.0 / jnp.sqrt(d_in)
    bound2 = 1.0 / jnp.sqrt(d_hidden)
    # Stored as (in, out) = PyTorch weight transposed.
    w1 = jax.random.uniform(k1, (d_in, d_hidden), dtype, -bound1, bound1)
    b1 = jax.random.uniform(k2, (1, d_hidden), dtype, -bound1, bound1)
    w2 = jax.random.uniform(k3, (d_hidden, d_out), dtype, -bound2, bound2)
    b2 = jax.random.uniform(k4, (1, d_out), dtype, -bound2, bound2)
    return w1, b1, w2, b2


if __name__ == "__main__":
    key = jax.random.PRNGKey(0)

    # --- small shapes (B=8, d_in=16, d_hidden=32, d_out=8): pad path ---------
    B, d_in, d_hidden, d_out = 8, 16, 32, 8
    kx, kp = jax.random.split(key)
    x = jax.random.normal(kx, (B, d_in), jnp.float32)
    w1, b1, w2, b2 = init_params(kp, d_in, d_hidden, d_out)
    ref = jnp.tanh(jnp.maximum(x @ w1 + b1, 0.0) @ w2 + b2)

    # f32 compute path: exact check of kernel structure / padding logic.
    params32, dims = prepare_params(w1, b1, w2, b2, compute_dtype=jnp.float32)
    out_f32 = one_hidden_layer(x, *params32, dims=dims)
    jax.block_until_ready(out_f32)
    assert out_f32.shape == (B, d_out)
    assert jnp.allclose(out_f32, ref, atol=1e-5, rtol=1e-5)

    # bf16 MXU path (default perf config): looser tolerance for the cast.
    params16, dims = prepare_params(w1, b1, w2, b2)
    out_bf16 = one_hidden_layer(x, *params16, dims=dims)
    jax.block_until_ready(out_bf16)
    assert out_bf16.shape == (B, d_out)
    assert jnp.allclose(out_bf16, ref, atol=2e-2, rtol=2e-2)

    # --- hidden-chunk streaming path (forced tiny VMEM budget), f32 ----------
    B2, d_in2, d_hid2, d_out2 = 64, 128, 512, 128
    kx2, kp2 = jax.random.split(kp)
    x2 = jax.random.normal(kx2, (B2, d_in2), jnp.float32)
    w1b, b1b, w2b, b2b = init_params(kp2, d_in2, d_hid2, d_out2)
    ref2 = jnp.tanh(jnp.maximum(x2 @ w1b + b1b, 0.0) @ w2b + b2b)
    p2, dims2 = prepare_params(w1b, b1b, w2b, b2b, compute_dtype=jnp.float32)
    out2 = one_hidden_layer(x2, *p2, dims=dims2, max_vmem_bytes=600 * 1024)
    jax.block_until_ready(out2)
    assert out2.shape == (B2, d_out2)
    assert jnp.allclose(out2, ref2, atol=1e-3, rtol=1e-3)

    print("KERNEL_OK")
</pallas_src>

<mosaic_0001>
module attributes {stable_mosaic.version = 11 : i64} {
  func.func @_mlp_kernel(%arg0: i32, %arg1: i32, %arg2: memref<8x128xf32, #tpu.memory_space<vmem>>, %arg3: memref<128x128xf32, #tpu.memory_space<vmem>>, %arg4: memref<1x128xf32, #tpu.memory_space<vmem>>, %arg5: memref<128x128xf32, #tpu.memory_space<vmem>>, %arg6: memref<1x128xf32, #tpu.memory_space<vmem>>, %arg7: memref<8x128xf32, #tpu.memory_space<vmem>>, %arg8: memref<8x128xf32, #tpu.memory_space<vmem>>) attributes {dimension_semantics = [#tpu.dimension_semantics<parallel>, #tpu.dimension_semantics<arbitrary>], iteration_bounds = array<i64: 1, 1>, scalar_prefetch = 0 : i64, scratch_operands = 1 : i64, tpu.core_type = #tpu.core_type<tc>, window_params = [{pipeline_mode = #tpu.pipeline_mode<double_buffered>, transform_indices = @transform_0, window_bounds = array<i64: 8, 128>}, {pipeline_mode = #tpu.pipeline_mode<synchronous>, transform_indices = @transform_1, window_bounds = array<i64: 128, 128>}, {pipeline_mode = #tpu.pipeline_mode<synchronous>, transform_indices = @transform_2, window_bounds = array<i64: 1, 128>}, {pipeline_mode = #tpu.pipeline_mode<synchronous>, transform_indices = @transform_3, window_bounds = array<i64: 128, 128>}, {pipeline_mode = #tpu.pipeline_mode<synchronous>, transform_indices = @transform_4, window_bounds = array<i64: 1, 128>}, {transform_indices = @transform_5, window_bounds = array<i64: 8, 128>}]} {
    %c0_i32 = arith.constant 0 : i32
    %0 = arith.cmpi eq, %arg1, %c0_i32 : i32
    %1 = arith.extui %0 : i1 to i32
    %c0_i32_0 = arith.constant 0 : i32
    %2 = arith.cmpi ne, %1, %c0_i32_0 : i32
    scf.if %2 {
      %cst_16 = arith.constant 0.000000e+00 : f32
      %19 = vector.broadcast %cst_16 : f32 to vector<8x128xf32>
      %c0_17 = arith.constant 0 : index
      %c0_18 = arith.constant 0 : index
      %20 = vector.load %arg8[%c0_17, %c0_18] : memref<8x128xf32, #tpu.memory_space<vmem>>, vector<8x128xf32>
      tpu.vector_store %arg8[%c0_17, %c0_18], %19 {strides = array<i32>} : memref<8x128xf32, #tpu.memory_space<vmem>>, vector<8x128xf32>,
    } else {
    }
    %c0 = arith.constant 0 : index
    %c0_1 = arith.constant 0 : index
    %3 = vector.load %arg2[%c0, %c0_1] : memref<8x128xf32, #tpu.memory_space<vmem>>, vector<8x128xf32>
    %c0_2 = arith.constant 0 : index
    %c0_3 = arith.constant 0 : index
    %4 = vector.load %arg3[%c0_2, %c0_3] : memref<128x128xf32, #tpu.memory_space<vmem>>, vector<128x128xf32>
    %cst = arith.constant dense<0.000000e+00> : vector<8x128xf32>
    %5 = tpu.matmul %3, %4, %cst {dimension_numbers = #tpu.dot_dimension_numbers<[1], [0], [0], [1], [0, 0, 1, 1], [], []>} : vector<8x128xf32>, vector<128x128xf32>, vector<8x128xf32> -> vector<8x128xf32>
    %c0_4 = arith.constant 0 : index
    %c0_5 = arith.constant 0 : index
    %6 = vector.load %arg4[%c0_4, %c0_5] : memref<1x128xf32, #tpu.memory_space<vmem>>, vector<1x128xf32>
    %7 = vector.broadcast %6 : vector<1x128xf32> to vector<8x128xf32>
    %8 = arith.addf %5, %7 : vector<8x128xf32>
    %cst_6 = arith.constant 0.000000e+00 : f32
    %9 = vector.broadcast %cst_6 : f32 to vector<8x128xf32>
    %10 = arith.maximumf %8, %9 : vector<8x128xf32>
    %c0_7 = arith.constant 0 : index
    %c0_8 = arith.constant 0 : index
    %11 = vector.load %arg8[%c0_7, %c0_8] : memref<8x128xf32, #tpu.memory_space<vmem>>, vector<8x128xf32>
    %c0_9 = arith.constant 0 : index
    %c0_10 = arith.constant 0 : index
    %12 = vector.load %arg5[%c0_9, %c0_10] : memref<128x128xf32, #tpu.memory_space<vmem>>, vector<128x128xf32>
    %cst_11 = arith.constant dense<0.000000e+00> : vector<8x128xf32>
    %13 = tpu.matmul %10, %12, %cst_11 {dimension_numbers = #tpu.dot_dimension_numbers<[1], [0], [0], [1], [0, 0, 1, 1], [], []>} : vector<8x128xf32>, vector<128x128xf32>, vector<8x128xf32> -> vector<8x128xf32>
    %14 = arith.addf %11, %13 : vector<8x128xf32>
    %c0_12 = arith.constant 0 : index
    %c0_13 = arith.constant 0 : index
    %15 = vector.load %arg8[%c0_12, %c0_13] : memref<8x128xf32, #tpu.memory_space<vmem>>, vector<8x128xf32>
    tpu.vector_store %arg8[%c0_12, %c0_13], %14 {strides = array<i32>} : memref<8x128xf32, #tpu.memory_space<vmem>>, vector<8x128xf32>,
    %c0_i32_14 = arith.constant 0 : i32
    %16 = arith.cmpi eq, %arg1, %c0_i32_14 : i32
    %17 = arith.extui %16 : i1 to i32
    %c0_i32_15 = arith.constant 0 : i32
    %18 = arith.cmpi ne, %17, %c0_i32_15 : i32
    scf.if %18 {
      %c0_16 = arith.constant 0 : index
      %c0_17 = arith.constant 0 : index
      %19 = vector.load %arg8[%c0_16, %c0_17] : memref<8x128xf32, #tpu.memory_space<vmem>>, vector<8x128xf32>
      %c0_18 = arith.constant 0 : index
      %c0_19 = arith.constant 0 : index
      %20 = vector.load %arg6[%c0_18, %c0_19] : memref<1x128xf32, #tpu.memory_space<vmem>>, vector<1x128xf32>
      %21 = vector.broadcast %20 : vector<1x128xf32> to vector<8x128xf32>
      %22 = arith.addf %19, %21 : vector<8x128xf32>
      %23 = math.tanh %22 : vector<8x128xf32>
      %c0_20 = arith.constant 0 : index
      %c0_21 = arith.constant 0 : index
      %24 = vector.load %arg7[%c0_20, %c0_21] : memref<8x128xf32, #tpu.memory_space<vmem>>, vector<8x128xf32>
      tpu.vector_store %arg7[%c0_20, %c0_21], %23 {strides = array<i32>} : memref<8x128xf32, #tpu.memory_space<vmem>>, vector<8x128xf32>,
    } else {
    }
    return
  }
  func.func @transform_0(%arg0: i32, %arg1: i32) -> (i32, i32) {
    %c0_i32 = arith.constant 0 : i32
    %c0_i32_0 = arith.constant 0 : i32
    return %arg0, %c0_i32 : i32, i32
  }
  func.func @transform_1(%arg0: i32, %arg1: i32) -> (i32, i32) {
    %c0_i32 = arith.constant 0 : i32
    %c0_i32_0 = arith.constant 0 : i32
    return %c0_i32, %arg1 : i32, i32
  }
  func.func @transform_2(%arg0: i32, %arg1: i32) -> (i32, i32) {
    %c0_i32 = arith.constant 0 : i32
    %c0_i32_0 = arith.constant 0 : i32
    return %c0_i32, %arg1 : i32, i32
  }
  func.func @transform_3(%arg0: i32, %arg1: i32) -> (i32, i32) {
    %c0_i32 = arith.constant 0 : i32
    %c0_i32_0 = arith.constant 0 : i32
    return %arg1, %c0_i32 : i32, i32
  }
  func.func @transform_4(%arg0: i32, %arg1: i32) -> (i32, i32) {
    %c0_i32 = arith.constant 0 : i32
    %c0_i32_0 = arith.constant 0 : i32
    %c0_i32_1 = arith.constant 0 : i32
    return %c0_i32, %c0_i32_0 : i32, i32
  }
  func.func @transform_5(%arg0: i32, %arg1: i32) -> (i32, i32) {
    %c0_i32 = arith.constant 0 : i32
    %c0_i32_0 = arith.constant 0 : i32
    return %arg0, %c0_i32 : i32, i32
  }
}

</mosaic_0001>

<llo_original>
// kernel: one_hidden_layer.1
$region0: #{one_hidden_layer.1}
  #allocation0 [shape = 'u32[]', space=smem, size = 0x4, offset = 0x4, fixed_abs, tag = 'smem constant byte address 0x4 - core index']
  #allocation1 [shape = 'u32[144,128]{1,0:T(1,128)}', space=vmem, size = 0x12000, scoped, tag = 'internal scratch']
  #allocation2 [shape = 'f32[8,128]{1,0:T(8,128)}', space=vmem, size = 0x1000, scoped, tag = 'scratch operand']
  %s0 = inlined_call_operand.vmem [shape: f32[8,128], index: 0, kind: input, shape index: {}]
  %s1 = inlined_call_operand.hbm [shape: f32[128,128], index: 1, kind: input, shape index: {}]
  %s2 = inlined_call_operand.vmem [shape: f32[1,128], index: 2, kind: input, shape index: {}]
  %s3 = inlined_call_operand.hbm [shape: f32[128,128], index: 3, kind: input, shape index: {}]
  %s4 = inlined_call_operand.vmem [shape: f32[1,128], index: 4, kind: input, shape index: {}]
  %s5 = inlined_call_operand.hbm [shape: f32[8,128], index: 5, kind: output, shape index: {}]
  %s6 = sld [smem:[#allocation0]]
  $region46: #{one_hidden_layer.1} parent=0
    _
  %s8 = ssub.s32 1, %s6
  %s9 = scalar_select 0, %s8, %s6
  $region1: #{one_hidden_layer.1} parent=0
    #allocation3 [shape = 'u8[65536]{0}', space=vmem, size = 0x10000, scoped, tag = 'input window, operand 1, single buffered']
    #allocation4 [shape = 's32[1]{0}', space=sflag, size = 0x4, scoped, tag = 'scoped memory for one_hidden_layer.1']
    #allocation5 [shape = 's32[1]{0}', space=sflag, size = 0x4, scoped, tag = 'scoped memory for one_hidden_layer.1']
    #allocation6 [shape = 'u8[65536]{0}', space=vmem, size = 0x10000, scoped, tag = 'input window, operand 3, single buffered']
    #allocation7 [shape = 's32[1]{0}', space=sflag, size = 0x4, scoped, tag = 'scoped memory for one_hidden_layer.1']
    #allocation8 [shape = 'u8[4096]{0}', space=vmem, size = 0x1000, scoped, tag = 'output window, operand 0, single buffered']
    %10 = vsyncpa [#allocation4], 0
    %11 = vsyncpa [#allocation7], 0
    %12 = vsyncpa [#allocation5], 0
    // Predicated region
    $region2: #{one_hidden_layer.1} parent=1 // pred_check
      _
    $region3: #{one_hidden_layer.1} parent=1 // pred_check_branch
      %14 = sbr.rel (0) target = $region5
    $region4: #{one_hidden_layer.1} parent=1 // pred_region
      _
    $region5: #{one_hidden_layer.1} parent=1 // pred_fallthru
      _
    // Predicated region
    $region6: #{one_hidden_layer.1} parent=1 // pred_check
      _
    $region7: #{one_hidden_layer.1} parent=1 // pred_check_branch
      %16 = sbr.rel (0) target = $region9
    $region8: #{one_hidden_layer.1} parent=1 // pred_region
      %s18 = ssub.s32 2048, 2048
      %19 = vsyncadd [#allocation4], %s18
      %s20 = sshll.u32 [#allocation3], 4
      %s21 = int_to_ptr.vmem [resolvable:$true] %s20
      %26 = dma.hbm_to_vmem [thread:$0]  %s1, 2048, %s21, [#allocation4], 128, 128, 8
    $region9: #{one_hidden_layer.1} parent=1 // pred_fallthru
      _
    // Predicated region
    $region10: #{one_hidden_layer.1} parent=1 // pred_check
      _
    $region11: #{one_hidden_layer.1} parent=1 // pred_check_branch
      %28 = sbr.rel (0) target = $region13
    $region12: #{one_hidden_layer.1} parent=1 // pred_region
      _
    $region13: #{one_hidden_layer.1} parent=1 // pred_fallthru
      _
    // Predicated region
    $region14: #{one_hidden_layer.1} parent=1 // pred_check
      _
    $region15: #{one_hidden_layer.1} parent=1 // pred_check_branch
      %30 = sbr.rel (0) target = $region17
    $region16: #{one_hidden_layer.1} parent=1 // pred_region
      %s32 = ssub.s32 2048, 2048
      %33 = vsyncadd [#allocation7], %s32
      %s34 = sshll.u32 [#allocation6], 4
      %s35 = int_to_ptr.vmem [resolvable:$true] %s34
      %40 = dma.hbm_to_vmem [thread:$0]  %s3, 2048, %s35, [#allocation7], 128, 128, 8
    $region17: #{one_hidden_layer.1} parent=1 // pred_fallthru
      _
    // Predicated region
    $region18: #{one_hidden_layer.1} parent=1 // pred_check
      _
    $region19: #{one_hidden_layer.1} parent=1 // pred_check_branch
      %42 = sbr.rel (0) target = $region21
    $region20: #{one_hidden_layer.1} parent=1 // pred_region
      _
    $region21: #{one_hidden_layer.1} parent=1 // pred_fallthru
      _
    // Predicated region
    $region22: #{one_hidden_layer.1} parent=1 // pred_check
      _
    $region23: #{one_hidden_layer.1} parent=1 // pred_check_branch
      %44 = sbr.rel (0) target = $region25
    $region24: #{one_hidden_layer.1} parent=1 // pred_region
      %45 = dma.done [#allocation4], 2048
    $region25: #{one_hidden_layer.1} parent=1 // pred_fallthru
      _
    // Predicated region
    $region26: #{one_hidden_layer.1} parent=1 // pred_check
      _
    $region27: #{one_hidden_layer.1} parent=1 // pred_check_branch
      %47 = sbr.rel (0) target = $region29
    $region28: #{one_hidden_layer.1} parent=1 // pred_region
      %48 = dma.done [#allocation7], 2048
    $region29: #{one_hidden_layer.1} parent=1 // pred_fallthru
      _
    %p49 = scmp.eq.s32.totalorder 0, 0
    // Predicated region
    $region30: #{one_hidden_layer.1} parent=1 // pred_check
      %p50 = pneg %p49
    $region31: #{one_hidden_layer.1} parent=1 // pred_check_branch
      %52 = sbr.rel (%p50) target = $region33
    $region32: #{one_hidden_layer.1} parent=1 // pred_region
      %53 = vst [vmem:[#allocation2] sm:$0xff] 0.0
    $region33: #{one_hidden_layer.1} parent=1 // pred_fallthru
      _
    %v54 = vld [vmem:[%s0] sm:$0xff]
    %v55 = vld [vmem:[#allocation3] sm:$0xff]
    %v56 = vld [vmem:[#allocation3 + $0x8] sm:$0xff]
    %v57 = vld [vmem:[#allocation3 + $0x10] sm:$0xff]
    %v58 = vld [vmem:[#allocation3 + $0x18] sm:$0xff]
    %v59 = vld [vmem:[#allocation3 + $0x20] sm:$0xff]
    %v60 = vld [vmem:[#allocation3 + $0x28] sm:$0xff]
    %v61 = vld [vmem:[#allocation3 + $0x30] sm:$0xff]
    %v62 = vld [vmem:[#allocation3 + $0x38] sm:$0xff]
    %v63 = vld [vmem:[#allocation3 + $0x40] sm:$0xff]
    %v64 = vld [vmem:[#allocation3 + $0x48] sm:$0xff]
    %v65 = vld [vmem:[#allocation3 + $0x50] sm:$0xff]
    %v66 = vld [vmem:[#allocation3 + $0x58] sm:$0xff]
    %v67 = vld [vmem:[#allocation3 + $0x60] sm:$0xff]
    %v68 = vld [vmem:[#allocation3 + $0x68] sm:$0xff]
    %v69 = vld [vmem:[#allocation3 + $0x70] sm:$0xff]
    %v70 = vld [vmem:[#allocation3 + $0x78] sm:$0xff]
    %v71 = vld [vmem:[%s2] sm:$0x1]
    %v73 = vlaneseq
    %v74 = vshrl.u32 %v73, 7
    %v75 = vsub.s32 0, %v74
    %v76 = vrot.slane %v71, %v75
    %78 = vmatprep.subr.mxu0 0.0
    %79 = vmatpush1.msra.mxu0 %v55
    %80 = vmatprep.subr.mxu0 0.0
    %81 = vmatpush1.msra.mxu0 %v56
    %82 = vmatprep.subr.mxu0 0.0
    %83 = vmatpush1.msra.mxu0 %v57
    %84 = vmatprep.subr.mxu0 0.0
    %85 = vmatpush1.msra.mxu0 %v58
    %86 = vmatprep.subr.mxu0 0.0
    %87 = vmatpush1.msra.mxu0 %v59
    %88 = vmatprep.subr.mxu0 0.0
    %89 = vmatpush1.msra.mxu0 %v60
    %90 = vmatprep.subr.mxu0 0.0
    %91 = vmatpush1.msra.mxu0 %v61
    %92 = vmatprep.subr.mxu0 0.0
    %93 = vmatpush1.msra.mxu0 %v62
    %94 = vmatprep.subr.mxu0 0.0
    %95 = vmatpush1.msra.mxu0 %v63
    %96 = vmatprep.subr.mxu0 0.0
    %97 = vmatpush1.msra.mxu0 %v64
    %98 = vmatprep.subr.mxu0 0.0
    %99 = vmatpush1.msra.mxu0 %v65
    %100 = vmatprep.subr.mxu0 0.0
    %101 = vmatpush1.msra.mxu0 %v66
    %102 = vmatprep.subr.mxu0 0.0
    %103 = vmatpush1.msra.mxu0 %v67
    %104 = vmatprep.subr.mxu0 0.0
    %105 = vmatpush1.msra.mxu0 %v68
    %106 = vmatprep.subr.mxu0 0.0
    %107 = vmatpush1.msra.mxu0 %v69
    %108 = vmatprep.subr.mxu0 0.0
    %109 = vmatpush1.msra.mxu0 %v70
    %110 = vmatprep.subr.mxu0 0.0
    %111 = vmatpush1.msra.mxu0 0.0
    %112 = vmatprep.subr.mxu0 0.0
    %113 = vmatpush1.msra.mxu0 0.0
    %114 = vmatprep.subr.mxu0 0.0
    %115 = vmatpush1.msra.mxu0 0.0
    %116 = vmatprep.subr.mxu0 0.0
    %117 = vmatpush1.msra.mxu0 0.0
    %118 = vmatprep.subr.mxu0 0.0
    %119 = vmatpush1.msra.mxu0 0.0
    %120 = vmatprep.subr.mxu0 0.0
    %121 = vmatpush1.msra.mxu0 0.0
    %122 = vmatprep.subr.mxu0 0.0
    %123 = vmatpush1.msra.mxu0 0.0
    %124 = vmatprep.subr.mxu0 0.0
    %125 = vmatpush1.msra.mxu0 0.0
    %126 = vmatprep.subr.mxu0 0.0
    %127 = vmatpush1.msra.mxu0 0.0
    %128 = vmatprep.subr.mxu0 0.0
    %129 = vmatpush1.msra.mxu0 0.0
    %130 = vmatprep.subr.mxu0 0.0
    %131 = vmatpush1.msra.mxu0 0.0
    %132 = vmatprep.subr.mxu0 0.0
    %133 = vmatpush1.msra.mxu0 0.0
    %134 = vmatprep.subr.mxu0 0.0
    %135 = vmatpush1.msra.mxu0 0.0
    %136 = vmatprep.subr.mxu0 0.0
    %137 = vmatpush1.msra.mxu0 0.0
    %138 = vmatprep.subr.mxu0 0.0
    %139 = vmatpush1.msra.mxu0 0.0
    %140 = vmatprep.subr.mxu0 0.0
    %141 = vmatpush1.msra.mxu0 0.0
    %142 = vmatprep.mubr.f32.mxu0 0.0
    %143 = vmatmul.mubr.f32.gmra.mrb[0].mxu0 %v54
    %v144 = vpop.f32.mrb[0].mxu0
    %v145 = vadd.f32 %v76, %v144
    %v146 = vpop.f32.mrb[0].mxu0
    %147 = vdwg.mxu0
    %v148 = vmax.f32 %v145, 0.0
    %v149 = vld [vmem:[#allocation2] sm:$0xff]
    %v150 = vld [vmem:[#allocation6] sm:$0xff]
    %v151 = vld [vmem:[#allocation6 + $0x8] sm:$0xff]
    %v152 = vld [vmem:[#allocation6 + $0x10] sm:$0xff]
    %v153 = vld [vmem:[#allocation6 + $0x18] sm:$0xff]
    %v154 = vld [vmem:[#allocation6 + $0x20] sm:$0xff]
    %v155 = vld [vmem:[#allocation6 + $0x28] sm:$0xff]
    %v156 = vld [vmem:[#allocation6 + $0x30] sm:$0xff]
    %v157 = vld [vmem:[#allocation6 + $0x38] sm:$0xff]
    %v158 = vld [vmem:[#allocation6 + $0x40] sm:$0xff]
    %v159 = vld [vmem:[#allocation6 + $0x48] sm:$0xff]
    %v160 = vld [vmem:[#allocation6 + $0x50] sm:$0xff]
    %v161 = vld [vmem:[#allocation6 + $0x58] sm:$0xff]
    %v162 = vld [vmem:[#allocation6 + $0x60] sm:$0xff]
    %v163 = vld [vmem:[#allocation6 + $0x68] sm:$0xff]
    %v164 = vld [vmem:[#allocation6 + $0x70] sm:$0xff]
    %v165 = vld [vmem:[#allocation6 + $0x78] sm:$0xff]
    %166 = vmatprep.subr.mxu0 0.0
    %167 = vmatpush1.msra.mxu0 %v150
    %168 = vmatprep.subr.mxu0 0.0
    %169 = vmatpush1.msra.mxu0 %v151
    %170 = vmatprep.subr.mxu0 0.0
    %171 = vmatpush1.msra.mxu0 %v152
    %172 = vmatprep.subr.mxu0 0.0
    %173 = vmatpush1.msra.mxu0 %v153
    %174 = vmatprep.subr.mxu0 0.0
    %175 = vmatpush1.msra.mxu0 %v154
    %176 = vmatprep.subr.mxu0 0.0
    %177 = vmatpush1.msra.mxu0 %v155
    %178 = vmatprep.subr.mxu0 0.0
    %179 = vmatpush1.msra.mxu0 %v156
    %180 = vmatprep.subr.mxu0 0.0
    %181 = vmatpush1.msra.mxu0 %v157
    %182 = vmatprep.subr.mxu0 0.0
    %183 = vmatpush1.msra.mxu0 %v158
    %184 = vmatprep.subr.mxu0 0.0
    %185 = vmatpush1.msra.mxu0 %v159
    %186 = vmatprep.subr.mxu0 0.0
    %187 = vmatpush1.msra.mxu0 %v160
    %188 = vmatprep.subr.mxu0 0.0
    %189 = vmatpush1.msra.mxu0 %v161
    %190 = vmatprep.subr.mxu0 0.0
    %191 = vmatpush1.msra.mxu0 %v162
    %192 = vmatprep.subr.mxu0 0.0
    %193 = vmatpush1.msra.mxu0 %v163
    %194 = vmatprep.subr.mxu0 0.0
    %195 = vmatpush1.msra.mxu0 %v164
    %196 = vmatprep.subr.mxu0 0.0
    %197 = vmatpush1.msra.mxu0 %v165
    %198 = vmatprep.subr.mxu0 0.0
    %199 = vmatpush1.msra.mxu0 0.0
    %200 = vmatprep.subr.mxu0 0.0
    %201 = vmatpush1.msra.mxu0 0.0
    %202 = vmatprep.subr.mxu0 0.0
    %203 = vmatpush1.msra.mxu0 0.0
    %204 = vmatprep.subr.mxu0 0.0
    %205 = vmatpush1.msra.mxu0 0.0
    %206 = vmatprep.subr.mxu0 0.0
    %207 = vmatpush1.msra.mxu0 0.0
    %208 = vmatprep.subr.mxu0 0.0
    %209 = vmatpush1.msra.mxu0 0.0
    %210 = vmatprep.subr.mxu0 0.0
    %211 = vmatpush1.msra.mxu0 0.0
    %212 = vmatprep.subr.mxu0 0.0
    %213 = vmatpush1.msra.mxu0 0.0
    %214 = vmatprep.subr.mxu0 0.0
    %215 = vmatpush1.msra.mxu0 0.0
    %216 = vmatprep.subr.mxu0 0.0
    %217 = vmatpush1.msra.mxu0 0.0
    %218 = vmatprep.subr.mxu0 0.0
    %219 = vmatpush1.msra.mxu0 0.0
    %220 = vmatprep.subr.mxu0 0.0
    %221 = vmatpush1.msra.mxu0 0.0
    %222 = vmatprep.subr.mxu0 0.0
    %223 = vmatpush1.msra.mxu0 0.0
    %224 = vmatprep.subr.mxu0 0.0
    %225 = vmatpush1.msra.mxu0 0.0
    %226 = vmatprep.subr.mxu0 0.0
    %227 = vmatpush1.msra.mxu0 0.0
    %228 = vmatprep.subr.mxu0 0.0
    %229 = vmatpush1.msra.mxu0 0.0
    %230 = vmatprep.mubr.f32.mxu0 0.0
    %231 = vmatmul.mubr.f32.gmra.mrb[0].mxu0 %v148
    %v232 = vpop.f32.mrb[0].mxu0
    %v233 = vadd.f32 0.0, %v232
    %v234 = vpop.f32.mrb[0].mxu0
    %235 = vdwg.mxu0
    %v236 = vadd.f32 %v149, %v233
    %237 = vst [vmem:[#allocation2] sm:$0xff] %v236
    // Predicated region
    $region34: #{one_hidden_layer.1} parent=1 // pred_check
      %p238 = pneg %p49
    $region35: #{one_hidden_layer.1} parent=1 // pred_check_branch
      %240 = sbr.rel (%p238) target = $region37
    $region36: #{one_hidden_layer.1} parent=1 // pred_region
      %v241 = vld [vmem:[#allocation2] sm:$0xff]
      %v242 = vld [vmem:[%s4] sm:$0x1]
      %v244 = vlaneseq
      %v245 = vshrl.u32 %v244, 7
      %v246 = vsub.s32 0, %v245
      %v247 = vrot.slane %v242, %v246
      %v249 = vadd.f32 %v241, %v247
      %v250 = vtanh.pop %v249
      %251 = vst [vmem:[#allocation8] sm:$0xff] %v250
    $region37: #{one_hidden_layer.1} parent=1 // pred_fallthru
      _
    // Predicated region
    $region38: #{one_hidden_layer.1} parent=1 // pred_check
      _
    $region39: #{one_hidden_layer.1} parent=1 // pred_check_branch
      %253 = sbr.rel (0) target = $region41
    $region40: #{one_hidden_layer.1} parent=1 // pred_region
      %s255 = ssub.s32 128, 128
      %256 = vsyncadd [#allocation5], %s255
      %s258 = sshll.u32 [#allocation8], 4
      %s259 = int_to_ptr.vmem [resolvable:$true] %s258
      %261 = dma.vmem_to_hbm [thread:$0]  %s259, 128, %s5, [#allocation5]
    $region41: #{one_hidden_layer.1} parent=1 // pred_fallthru
      _
    // Predicated region
    $region42: #{one_hidden_layer.1} parent=1 // pred_check
      _
    $region43: #{one_hidden_layer.1} parent=1 // pred_check_branch
      %263 = sbr.rel (0) target = $region45
    $region44: #{one_hidden_layer.1} parent=1 // pred_region
      %264 = dma.done [#allocation5], 128
    $region45: #{one_hidden_layer.1} parent=1 // pred_fallthru
      _
    %265 = vsyncpa [#allocation4], 1
    %266 = vsyncpa [#allocation7], 1
    %267 = vsyncpa [#allocation5], 1

</llo_original>
